<compile_context>
chip_gen: v7x
topology: tpu7x:2x2x1
jax: 0.10.0
libtpu: 0.0.40
codegen_flags: <defaults>
</compile_context>

<pallas_src>
import functools

import jax
import jax.numpy as jnp
from jax.experimental import pallas as pl
from jax.experimental.pallas import tpu as pltpu


def _round_up(x: int, m: int) -> int:
    return (x + m - 1) // m * m


def _critic_kernel_vhead(x_ref, w1_ref, b1_ref, w2row_ref, b2_ref, out_ref):
    # fc1: (tb, in) x (in, Hp) on the MXU, bias + ReLU on the VPU (all f32).
    h = jnp.dot(x_ref[...], w1_ref[...], preferred_element_type=jnp.float32)
    h = jnp.maximum(h + b1_ref[...], 0.0)          # b1 is (1, Hp), broadcasts
    # N=1 head: a (tb,Hp)x(Hp,1) MXU pass would fill one useful column and pay
    # the result-FIFO drain; do it as VPU mul + XLU lane-reduce instead.
    v = jnp.sum(h * w2row_ref[...], axis=-1, keepdims=True)
    out_ref[...] = (v + b2_ref[0, 0]).astype(out_ref.dtype)   # b2 scalar, SMEM


def _critic_kernel_general(x_ref, w1_ref, b1_ref, w2_ref, b2_ref, out_ref):
    h = jnp.dot(x_ref[...], w1_ref[...], preferred_element_type=jnp.float32)
    h = jnp.maximum(h + b1_ref[...], 0.0)
    # Head weight is pre-transposed to (Hp, out) in the wrapper -> plain MXU
    # dot, no in-kernel transpose.
    v = jnp.dot(h, w2_ref[...], preferred_element_type=jnp.float32)
    out_ref[...] = (v + b2_ref[...]).astype(out_ref.dtype)


@functools.partial(jax.jit, static_argnames=("block_rows", "stream_bf16"))
def critic_v_forward(x, w1, b1, w2, b2, *, block_rows=4096, stream_bf16=False):
    batch, in_dim = x.shape
    hidden = w1.shape[1]
    out_dim = w2.shape[1]

    # --- wrapper-side layout plumbing (outside the kernel) ------------------
    # Pad hidden to a full 128-lane width (exact: ReLU(0)=0, zero head rows).
    hidden_p = _round_up(hidden, 128)
    w1_p = jnp.pad(w1, ((0, 0), (0, hidden_p - hidden)))
    b1_p = jnp.pad(b1, ((0, 0), (0, hidden_p - hidden)))

    if stream_bf16:
        # Accuracy tradeoff vs. the f32 reference; accumulation stays f32.
        x_k = x.astype(jnp.bfloat16)
        w1_p = w1_p.astype(jnp.bfloat16)
    else:
        x_k = x

    # Row tile: big enough to amortize the ~0.35 us per-grid-step overhead,
    # rounded to the sublane multiple, and capped at ~half the batch so the
    # grid never collapses to a single step (keeps both v7x TCs busy).
    sub = 16 if x_k.dtype == jnp.bfloat16 else 8
    tb = min(_round_up(block_rows, sub), _round_up(pl.cdiv(batch, 2), sub))
    grid = (pl.cdiv(batch, tb),)    # last block clipped by Pallas; no x pad

    if out_dim == 1:
        kernel = _critic_kernel_vhead
        w2_k = jnp.pad(w2.T, ((0, 0), (0, hidden_p - hidden)))   # (1, Hp)
        w2_spec = pl.BlockSpec((1, hidden_p), lambda i: (0, 0))
        b2_k = b2.reshape(1, 1).astype(jnp.float32)
        b2_spec = pl.BlockSpec(memory_space=pltpu.MemorySpace.SMEM)
    else:
        kernel = _critic_kernel_general
        w2_k = jnp.pad(w2, ((0, hidden_p - hidden), (0, 0)))      # (Hp, out)
        w2_spec = pl.BlockSpec((hidden_p, out_dim), lambda i: (0, 0))
        b2_k = b2.reshape(1, out_dim)
        b2_spec = pl.BlockSpec((1, out_dim), lambda i: (0, 0))

    return pl.pallas_call(
        kernel,
        out_shape=jax.ShapeDtypeStruct((batch, out_dim), jnp.float32),
        grid=grid,
        in_specs=[
            pl.BlockSpec((tb, in_dim), lambda i: (i, 0)),        # x: streamed
            pl.BlockSpec((in_dim, hidden_p), lambda i: (0, 0)),  # W1: resident
            pl.BlockSpec((1, hidden_p), lambda i: (0, 0)),       # b1: resident
            w2_spec,                                             # head weight
            b2_spec,                                             # head bias
        ],
        out_specs=pl.BlockSpec((tb, out_dim), lambda i: (i, 0)),
        compiler_params=pltpu.CompilerParams(
            dimension_semantics=("parallel",),      # batch tiles independent
            vmem_limit_bytes=32 * 1024 * 1024,      # headroom for tile sweeps
        ),
    )(x_k, w1_p, b1_p, w2_k, b2_k)


def init_linear_params(key, fan_in, fan_out):
    # Matches PyTorch nn.Linear default init: U(-1/sqrt(fan_in), 1/sqrt(fan_in)).
    kw, kb = jax.random.split(key)
    bound = 1.0 / jnp.sqrt(jnp.float32(fan_in))
    w = jax.random.uniform(kw, (fan_in, fan_out), jnp.float32, -bound, bound)
    b = jax.random.uniform(kb, (1, fan_out), jnp.float32, -bound, bound)
    return w, b


def _reference(x, w1, b1, w2, b2):
    return jnp.maximum(x @ w1 + b1, 0.0) @ w2 + b2


if __name__ == "__main__":
    # TODO(synk): the `layer_norm=True` init branch of the PyTorch module is
    # dead/broken in the reference (calls `layer_norm(...)` on itself); only
    # the default forward path is implemented.
    input_dim = 32
    hidden_dim = 100
    output_dim = 1

    key = jax.random.PRNGKey(0)
    k_x, k_x2, k_x3, k_fc1, k_head = jax.random.split(key, 5)

    w1, b1 = init_linear_params(k_fc1, input_dim, hidden_dim)
    w2, b2 = init_linear_params(k_head, hidden_dim, output_dim)

    ok = True

    # Small case matching the original test shape.
    x = jax.random.normal(k_x, (8, input_dim), jnp.float32)
    out = critic_v_forward(x, w1, b1, w2, b2)
    jax.block_until_ready(out)
    ref = _reference(x, w1, b1, w2, b2)
    ok &= out.shape == (8, output_dim)
    ok &= bool(jnp.allclose(out, ref, atol=1e-5, rtol=1e-5))

    # Non-multiple-of-tile batch: exercises the clipped (masked) last block,
    # with no wrapper-side padding copy of x.
    x2 = jax.random.normal(k_x2, (70, input_dim), jnp.float32)
    out2 = critic_v_forward(x2, w1, b1, w2, b2)
    jax.block_until_ready(out2)
    ref2 = _reference(x2, w1, b1, w2, b2)
    ok &= out2.shape == (70, output_dim)
    ok &= bool(jnp.allclose(out2, ref2, atol=1e-5, rtol=1e-5))

    # bf16-streaming smoke test (accuracy tradeoff path); loose tolerance.
    x3 = jax.random.normal(k_x3, (64, input_dim), jnp.float32)
    out3 = critic_v_forward(x3, w1, b1, w2, b2, stream_bf16=True)
    jax.block_until_ready(out3)
    ref3 = _reference(x3, w1, b1, w2, b2)
    ok &= out3.shape == (64, output_dim)
    ok &= bool(jnp.allclose(out3, ref3, atol=5e-2, rtol=5e-2))

    assert ok
    print("KERNEL_OK")
</pallas_src>

<mosaic_0001>
module attributes {stable_mosaic.version = 11 : i64} {
  func.func @_critic_kernel_vhead(%arg0: i32, %arg1: memref<8x32xf32, #tpu.memory_space<vmem>>, %arg2: memref<32x128xf32, #tpu.memory_space<vmem>>, %arg3: memref<1x128xf32, #tpu.memory_space<vmem>>, %arg4: memref<1x128xf32, #tpu.memory_space<vmem>>, %arg5: memref<1x1xf32, #tpu.memory_space<smem>>, %arg6: memref<8x1xf32, #tpu.memory_space<vmem>>) attributes {dimension_semantics = [#tpu.dimension_semantics<parallel>], iteration_bounds = array<i64: 1>, scalar_prefetch = 0 : i64, scratch_operands = 0 : i64, tpu.core_type = #tpu.core_type<tc>, window_params = [{transform_indices = @transform_0, window_bounds = array<i64: 8, 32>}, {pipeline_mode = #tpu.pipeline_mode<synchronous>, transform_indices = @transform_1, window_bounds = array<i64: 32, 128>}, {pipeline_mode = #tpu.pipeline_mode<synchronous>, transform_indices = @transform_2, window_bounds = array<i64: 1, 128>}, {pipeline_mode = #tpu.pipeline_mode<synchronous>, transform_indices = @transform_3, window_bounds = array<i64: 1, 128>}, {transform_indices = @transform_4, window_bounds = array<i64: 1, 1>}, {transform_indices = @transform_5, window_bounds = array<i64: 8, 1>}]} {
    %c0 = arith.constant 0 : index
    %c0_0 = arith.constant 0 : index
    %0 = vector.load %arg1[%c0, %c0_0] : memref<8x32xf32, #tpu.memory_space<vmem>>, vector<8x32xf32>
    %c0_1 = arith.constant 0 : index
    %c0_2 = arith.constant 0 : index
    %1 = vector.load %arg2[%c0_1, %c0_2] : memref<32x128xf32, #tpu.memory_space<vmem>>, vector<32x128xf32>
    %cst = arith.constant dense<0.000000e+00> : vector<8x128xf32>
    %2 = tpu.matmul %0, %1, %cst {dimension_numbers = #tpu.dot_dimension_numbers<[1], [0], [0], [1], [0, 0, 1, 1], [], []>} : vector<8x32xf32>, vector<32x128xf32>, vector<8x128xf32> -> vector<8x128xf32>
    %c0_3 = arith.constant 0 : index
    %c0_4 = arith.constant 0 : index
    %3 = vector.load %arg3[%c0_3, %c0_4] : memref<1x128xf32, #tpu.memory_space<vmem>>, vector<1x128xf32>
    %4 = vector.broadcast %3 : vector<1x128xf32> to vector<8x128xf32>
    %5 = arith.addf %2, %4 : vector<8x128xf32>
    %cst_5 = arith.constant 0.000000e+00 : f32
    %6 = vector.broadcast %cst_5 : f32 to vector<8x128xf32>
    %7 = arith.maximumf %5, %6 : vector<8x128xf32>
    %c0_6 = arith.constant 0 : index
    %c0_7 = arith.constant 0 : index
    %8 = vector.load %arg4[%c0_6, %c0_7] : memref<1x128xf32, #tpu.memory_space<vmem>>, vector<1x128xf32>
    %9 = vector.broadcast %8 : vector<1x128xf32> to vector<8x128xf32>
    %10 = arith.mulf %7, %9 : vector<8x128xf32>
    %cst_8 = arith.constant dense<0.000000e+00> : vector<8xf32>
    %11 = vector.multi_reduction <add>, %10, %cst_8 [1] : vector<8x128xf32> to vector<8xf32>
    %12 = vector.shape_cast %11 : vector<8xf32> to vector<8x1xf32>
    %c0_9 = arith.constant 0 : index
    %c0_10 = arith.constant 0 : index
    %13 = memref.load %arg5[%c0_9, %c0_10] : memref<1x1xf32, #tpu.memory_space<smem>>
    %14 = vector.broadcast %13 : f32 to vector<8x1xf32>
    %15 = arith.addf %12, %14 : vector<8x1xf32>
    %c0_11 = arith.constant 0 : index
    %c0_12 = arith.constant 0 : index
    %16 = vector.load %arg6[%c0_11, %c0_12] : memref<8x1xf32, #tpu.memory_space<vmem>>, vector<8x1xf32>
    tpu.vector_store %arg6[%c0_11, %c0_12], %15 {strides = array<i32>} : memref<8x1xf32, #tpu.memory_space<vmem>>, vector<8x1xf32>,
    return
  }
  func.func @transform_0(%arg0: i32) -> (i32, i32) {
    %c0_i32 = arith.constant 0 : i32
    %c0_i32_0 = arith.constant 0 : i32
    return %arg0, %c0_i32 : i32, i32
  }
  func.func @transform_1(%arg0: i32) -> (i32, i32) {
    %c0_i32 = arith.constant 0 : i32
    %c0_i32_0 = arith.constant 0 : i32
    %c0_i32_1 = arith.constant 0 : i32
    return %c0_i32, %c0_i32_0 : i32, i32
  }
  func.func @transform_2(%arg0: i32) -> (i32, i32) {
    %c0_i32 = arith.constant 0 : i32
    %c0_i32_0 = arith.constant 0 : i32
    %c0_i32_1 = arith.constant 0 : i32
    return %c0_i32, %c0_i32_0 : i32, i32
  }
  func.func @transform_3(%arg0: i32) -> (i32, i32) {
    %c0_i32 = arith.constant 0 : i32
    %c0_i32_0 = arith.constant 0 : i32
    %c0_i32_1 = arith.constant 0 : i32
    return %c0_i32, %c0_i32_0 : i32, i32
  }
  func.func @transform_4(%arg0: i32) -> (i32, i32) {
    %c0_i32 = arith.constant 0 : i32
    %c0_i32_0 = arith.constant 0 : i32
    %c0_i32_1 = arith.constant 0 : i32
    return %c0_i32, %c0_i32_0 : i32, i32
  }
  func.func @transform_5(%arg0: i32) -> (i32, i32) {
    %c0_i32 = arith.constant 0 : i32
    %c0_i32_0 = arith.constant 0 : i32
    return %arg0, %c0_i32 : i32, i32
  }
}

</mosaic_0001>

<llo_original>
// kernel: critic_v_forward.1
$region0: #{critic_v_forward.1}
  #allocation0 [shape = 'u32[]', space=smem, size = 0x4, offset = 0x4, fixed_abs, tag = 'smem constant byte address 0x4 - core index']
  #allocation1 [shape = 'u32[144,128]{1,0:T(1,128)}', space=vmem, size = 0x12000, scoped, tag = 'internal scratch']
  #allocation2 [shape = 'f32[1,1]{1,0:T(1,128)S(6)}', space=smem, size = 0x200, scoped, tag = 'scoped memory for critic_v_forward.1']
  %s0 = inlined_call_operand.vmem [shape: f32[8,32], index: 0, kind: input, shape index: {}]
  %s1 = inlined_call_operand.vmem [shape: f32[32,128], index: 1, kind: input, shape index: {}]
  %s2 = inlined_call_operand.vmem [shape: f32[1,128], index: 2, kind: input, shape index: {}]
  %s3 = inlined_call_operand.vmem [shape: f32[1,128], index: 3, kind: input, shape index: {}]
  %s4 = inlined_call_operand.<no memory space> [shape: f32[1,1], index: 4, kind: input, shape index: {}]
  %s5 = inlined_call_operand.vmem [shape: f32[8,1], index: 5, kind: output, shape index: {}]
  %s6 = sld [smem:[#allocation0]]
  $region30: #{critic_v_forward.1} parent=0
    _
  %s8 = ssub.s32 1, %s6
  %s9 = scalar_select 0, %s8, %s6
  %10 = sst [smem:[#allocation2]] %s4
  // Predicated region
  $region2: #{critic_v_forward.1} parent=0 // pred_check
    _
  $region3: #{critic_v_forward.1} parent=0 // pred_check_branch
    %12 = sbr.rel (0) target = $region5
  $region4: #{critic_v_forward.1} parent=0 // pred_region
    _
  $region5: #{critic_v_forward.1} parent=0 // pred_fallthru
    _
  // Predicated region
  $region6: #{critic_v_forward.1} parent=0 // pred_check
    _
  $region7: #{critic_v_forward.1} parent=0 // pred_check_branch
    %14 = sbr.rel (0) target = $region9
  $region8: #{critic_v_forward.1} parent=0 // pred_region
    _
  $region9: #{critic_v_forward.1} parent=0 // pred_fallthru
    _
  // Predicated region
  $region10: #{critic_v_forward.1} parent=0 // pred_check
    _
  $region11: #{critic_v_forward.1} parent=0 // pred_check_branch
    %16 = sbr.rel (0) target = $region13
  $region12: #{critic_v_forward.1} parent=0 // pred_region
    _
  $region13: #{critic_v_forward.1} parent=0 // pred_fallthru
    _
  // Predicated region
  $region14: #{critic_v_forward.1} parent=0 // pred_check
    _
  $region15: #{critic_v_forward.1} parent=0 // pred_check_branch
    %18 = sbr.rel (0) target = $region17
  $region16: #{critic_v_forward.1} parent=0 // pred_region
    _
  $region17: #{critic_v_forward.1} parent=0 // pred_fallthru
    _
  // Predicated region
  $region18: #{critic_v_forward.1} parent=0 // pred_check
    _
  $region19: #{critic_v_forward.1} parent=0 // pred_check_branch
    %20 = sbr.rel (0) target = $region21
  $region20: #{critic_v_forward.1} parent=0 // pred_region
    _
  $region21: #{critic_v_forward.1} parent=0 // pred_fallthru
    _
  %v21 = vld [vmem:[%s0] sm:$0xff]
  %v22 = vld [vmem:[%s1] sm:$0xff]
  %v23 = vld [vmem:[%s1 + $0x8] sm:$0xff]
  %v24 = vld [vmem:[%s1 + $0x10] sm:$0xff]
  %v25 = vld [vmem:[%s1 + $0x18] sm:$0xff]
  %v26 = vld [vmem:[%s2] sm:$0x1]
  %v28 = vlaneseq
  %v29 = vshrl.u32 %v28, 7
  %v30 = vsub.s32 0, %v29
  %v31 = vrot.slane %v26, %v30
  %vm33 = vcmask 261120
  %v35 = vsel %vm33, %v21, 0
  %37 = vmatprep.subr.mxu0 0.0
  %38 = vmatpush1.msra.mxu0 %v22
  %39 = vmatprep.subr.mxu0 0.0
  %40 = vmatpush1.msra.mxu0 %v23
  %41 = vmatprep.subr.mxu0 0.0
  %42 = vmatpush1.msra.mxu0 %v24
  %43 = vmatprep.subr.mxu0 0.0
  %44 = vmatpush1.msra.mxu0 %v25
  %45 = vmatprep.subr.mxu0 0.0
  %46 = vmatpush1.msra.mxu0 0.0
  %47 = vmatprep.subr.mxu0 0.0
  %48 = vmatpush1.msra.mxu0 0.0
  %49 = vmatprep.subr.mxu0 0.0
  %50 = vmatpush1.msra.mxu0 0.0
  %51 = vmatprep.subr.mxu0 0.0
  %52 = vmatpush1.msra.mxu0 0.0
  %53 = vmatprep.subr.mxu0 0.0
  %54 = vmatpush1.msra.mxu0 0.0
  %55 = vmatprep.subr.mxu0 0.0
  %56 = vmatpush1.msra.mxu0 0.0
  %57 = vmatprep.subr.mxu0 0.0
  %58 = vmatpush1.msra.mxu0 0.0
  %59 = vmatprep.subr.mxu0 0.0
  %60 = vmatpush1.msra.mxu0 0.0
  %61 = vmatprep.subr.mxu0 0.0
  %62 = vmatpush1.msra.mxu0 0.0
  %63 = vmatprep.subr.mxu0 0.0
  %64 = vmatpush1.msra.mxu0 0.0
  %65 = vmatprep.subr.mxu0 0.0
  %66 = vmatpush1.msra.mxu0 0.0
  %67 = vmatprep.subr.mxu0 0.0
  %68 = vmatpush1.msra.mxu0 0.0
  %69 = vmatprep.subr.mxu0 0.0
  %70 = vmatpush1.msra.mxu0 0.0
  %71 = vmatprep.subr.mxu0 0.0
  %72 = vmatpush1.msra.mxu0 0.0
  %73 = vmatprep.subr.mxu0 0.0
  %74 = vmatpush1.msra.mxu0 0.0
  %75 = vmatprep.subr.mxu0 0.0
  %76 = vmatpush1.msra.mxu0 0.0
  %77 = vmatprep.subr.mxu0 0.0
  %78 = vmatpush1.msra.mxu0 0.0
  %79 = vmatprep.subr.mxu0 0.0
  %80 = vmatpush1.msra.mxu0 0.0
  %81 = vmatprep.subr.mxu0 0.0
  %82 = vmatpush1.msra.mxu0 0.0
  %83 = vmatprep.subr.mxu0 0.0
  %84 = vmatpush1.msra.mxu0 0.0
  %85 = vmatprep.subr.mxu0 0.0
  %86 = vmatpush1.msra.mxu0 0.0
  %87 = vmatprep.subr.mxu0 0.0
  %88 = vmatpush1.msra.mxu0 0.0
  %89 = vmatprep.subr.mxu0 0.0
  %90 = vmatpush1.msra.mxu0 0.0
  %91 = vmatprep.subr.mxu0 0.0
  %92 = vmatpush1.msra.mxu0 0.0
  %93 = vmatprep.subr.mxu0 0.0
  %94 = vmatpush1.msra.mxu0 0.0
  %95 = vmatprep.subr.mxu0 0.0
  %96 = vmatpush1.msra.mxu0 0.0
  %97 = vmatprep.subr.mxu0 0.0
  %98 = vmatpush1.msra.mxu0 0.0
  %99 = vmatprep.subr.mxu0 0.0
  %100 = vmatpush1.msra.mxu0 0.0
  %101 = vmatprep.mubr.f32.mxu0 0.0
  %102 = vmatmul.mubr.f32.gmra.mrb[0].mxu0 %v35
  %v103 = vpop.f32.mrb[0].mxu0
  %v104 = vadd.f32 %v31, %v103
  %v105 = vpop.f32.mrb[0].mxu0
  %106 = vdwg.mxu0
  %v107 = vmax.f32 %v104, 0.0
  %v108 = vld [vmem:[%s3] sm:$0x1]
  %v110 = vlaneseq
  %v111 = vshrl.u32 %v110, 7
  %v112 = vsub.s32 0, %v111
  %v113 = vrot.slane %v108, %v112
  %v115 = vmul.f32 %v107, %v113
  %116 = vadd.xlane.f32.xlu0 %v115
  %v117 = vpop.xlane.xlu0 %116
  %s118 = sld [smem:[#allocation2]]
  %v119 = vstv %s118
  %v120 = vadd.f32 %v117, %v119
  %vm121 = vcmask 7168
  %122 = vst.msk [vmem:[%s5] sm:$0xff] %vm121, %v120
  // Predicated region
  $region22: #{critic_v_forward.1} parent=0 // pred_check
    _
  $region23: #{critic_v_forward.1} parent=0 // pred_check_branch
    %124 = sbr.rel (0) target = $region25
  $region24: #{critic_v_forward.1} parent=0 // pred_region
    _
  $region25: #{critic_v_forward.1} parent=0 // pred_fallthru
    _
  // Predicated region
  $region26: #{critic_v_forward.1} parent=0 // pred_check
    _
  $region27: #{critic_v_forward.1} parent=0 // pred_check_branch
    %126 = sbr.rel (0) target = $region29
  $region28: #{critic_v_forward.1} parent=0 // pred_region
    _
  $region29: #{critic_v_forward.1} parent=0 // pred_fallthru
    _

</llo_original>
